<compile_context>
chip_gen: v5e
topology: v5e:2x2
jax: 0.10.0
libtpu: 0.0.40
codegen_flags: <defaults>
</compile_context>

<pallas_src>
import functools

import jax
import jax.numpy as jnp
from jax.experimental import pallas as pl
from jax.experimental.pallas import tpu as pltpu

# Logical feature dims and 128-lane-padded output dims.
D_IN, D_H1, D_H2, D_OUT = 784, 300, 100, 10
D_H1_P, D_H2_P, D_OUT_P = 384, 128, 128


def _round_up(n, m):
    return (n + m - 1) // m * m


def lenet300_kernel(x_ref, w1_ref, b1_ref, w2_ref, b2_ref, w3_ref, b3_ref, out_ref):
    # f32 -> bf16 cast on the VPU (hidden under the x DMA); MXU accumulates f32,
    # bias + ReLU epilogues stay f32 on the VPU.
    x = x_ref[...].astype(jnp.bfloat16)
    # fc1 + ReLU
    h1 = jnp.dot(x, w1_ref[...], preferred_element_type=jnp.float32)
    h1 = jnp.maximum(h1 + b1_ref[...], 0.0)
    # fc2 + ReLU
    h2 = jnp.dot(h1.astype(jnp.bfloat16), w2_ref[...], preferred_element_type=jnp.float32)
    h2 = jnp.maximum(h2 + b2_ref[...], 0.0)
    # fc3 (logits live in lanes 0..9; padded weight/bias lanes are zero so the
    # rest of the 128-wide block is exactly zero)
    logits = jnp.dot(h2.astype(jnp.bfloat16), w3_ref[...], preferred_element_type=jnp.float32)
    out_ref[...] = (logits + b3_ref[...]).astype(out_ref.dtype)
    # TODO(synk): if vld/vst spill traffic ever binds at tile_b=2048, chunk the
    # compute over 256-512 row sub-slices of the same DMA tile (lax.fori_loop).


def prepare_params(params):
    """One-time preprocessing: (out,in)->(in,out) transpose, zero-pad to
    lane-aligned shapes, weights -> bf16 (biases stay f32 for the f32 epilogue).
    Keep pad-then-cast order so padded logit lanes stay exactly zero."""
    w1, b1, w2, b2, w3, b3 = params

    def prep_w(w, in_p, out_p):
        wt = w.T  # (in, out)
        wt = jnp.pad(wt, ((0, in_p - wt.shape[0]), (0, out_p - wt.shape[1])))
        return wt.astype(jnp.bfloat16)

    def prep_b(b, out_p):
        return jnp.pad(b, (0, out_p - b.shape[0])).reshape(1, out_p).astype(jnp.float32)

    return (prep_w(w1, D_IN, D_H1_P), prep_b(b1, D_H1_P),
            prep_w(w2, D_H1_P, D_H2_P), prep_b(b2, D_H2_P),
            prep_w(w3, D_H2_P, D_OUT_P), prep_b(b3, D_OUT_P))


def _choose_tile_b(batch):
    """Batch-tile heuristic (batch is a static Python int under jit)."""
    if batch <= 512:
        return batch  # single full-extent block: always layout-legal, no waste
    # >= 2 tiles so both v7x TensorCores get work; 2048 cap keeps the f32 x
    # tile (6.4 MiB, double-buffered) comfortably inside every generation's
    # VMEM budget while amortizing per-step overhead.
    return min(2048, _round_up(pl.cdiv(batch, 2), 256))


@functools.partial(jax.jit, static_argnames=("tile_b",))
def lenet300_forward(x, prepared, tile_b=None):
    """x: (B, ...) with prod(...) == 784, any float dtype. prepared: output of
    prepare_params(). Returns (B, 10) float32 logits."""
    w1t, b1, w2t, b2, w3t, b3 = prepared
    B = x.shape[0]
    x2d = x.reshape(B, -1)  # same as torch .view; no pad, no dtype copy
    assert x2d.shape[1] == D_IN, f"expected {D_IN} features, got {x2d.shape[1]}"

    if tile_b is None:
        tile_b = _choose_tile_b(B)
    tile_b = min(tile_b, B)
    if tile_b < B:
        # Sub-full tiles must be sublane (8) aligned; full-extent tiles need not be.
        tile_b = min(_round_up(tile_b, 8), B)

    grid = (pl.cdiv(B, tile_b),)

    def resident(shape):  # weights/biases: VMEM-resident across all batch tiles
        return pl.BlockSpec(shape, lambda i: (0, 0), memory_space=pltpu.VMEM)

    flops = 2 * B * (D_IN * D_H1_P + D_H1_P * D_H2_P + D_H2_P * D_OUT_P)
    bytes_accessed = (x2d.size * x2d.dtype.itemsize
                      + (w1t.size + w2t.size + w3t.size) * 2
                      + (b1.size + b2.size + b3.size) * 4
                      + B * D_OUT_P * 4)

    out = pl.pallas_call(
        lenet300_kernel,
        out_shape=jax.ShapeDtypeStruct((B, D_OUT_P), jnp.float32),
        grid=grid,
        in_specs=[
            pl.BlockSpec((tile_b, D_IN), lambda i: (i, 0), memory_space=pltpu.VMEM),
            resident(w1t.shape), resident(b1.shape),
            resident(w2t.shape), resident(b2.shape),
            resident(w3t.shape), resident(b3.shape),
        ],
        out_specs=pl.BlockSpec((tile_b, D_OUT_P), lambda i: (i, 0),
                               memory_space=pltpu.VMEM),
        compiler_params=pltpu.CompilerParams(
            dimension_semantics=("parallel",),        # shard batch tiles across TCs
            vmem_limit_bytes=48 * 1024 * 1024),
        cost_estimate=pl.CostEstimate(
            flops=flops, transcendentals=0, bytes_accessed=bytes_accessed),
    )(x2d, w1t, b1, w2t, b2, w3t, b3)

    return out[:, :D_OUT]


def init_params(key):
    """Deterministic synthetic params with torch.nn.Linear shape conventions."""
    ks = jax.random.split(key, 6)

    def linear(kw, kb, fan_in, fan_out):
        bound = 1.0 / jnp.sqrt(fan_in)
        w = jax.random.uniform(kw, (fan_out, fan_in), jnp.float32, -bound, bound)
        b = jax.random.uniform(kb, (fan_out,), jnp.float32, -bound, bound)
        return w, b

    w1, b1 = linear(ks[0], ks[1], 784, 300)
    w2, b2 = linear(ks[2], ks[3], 300, 100)
    w3, b3 = linear(ks[4], ks[5], 100, 10)
    return (w1, b1, w2, b2, w3, b3)


if __name__ == "__main__":
    key = jax.random.PRNGKey(0)
    k_x, k_p = jax.random.split(key)

    # Small batch, MNIST-like input implied by fc1's 784 input features.
    x = jax.random.normal(k_x, (2, 1, 28, 28), dtype=jnp.float32)
    params = init_params(k_p)
    prepared = prepare_params(params)          # one-time transpose/pad/cast

    out = lenet300_forward(x, prepared)
    out = jax.block_until_ready(out)

    # Pure-JAX f32 reference of the same math (tolerance loosened for bf16 weights).
    w1, b1, w2, b2, w3, b3 = params
    xf = x.reshape(x.shape[0], -1)
    ref = jnp.maximum(xf @ w1.T + b1, 0.0)
    ref = jnp.maximum(ref @ w2.T + b2, 0.0)
    ref = ref @ w3.T + b3

    assert out.shape == (2, 10)
    assert jnp.allclose(out, ref, atol=5e-2, rtol=5e-2), \
        f"max abs err {float(jnp.max(jnp.abs(out - ref)))}"

    print("KERNEL_OK")
</pallas_src>

<mosaic_0001>
module attributes {stable_mosaic.version = 11 : i64} {
  func.func @lenet300_kernel(%arg0: i32, %arg1: memref<2x784xf32, #tpu.memory_space<vmem>>, %arg2: memref<784x384xbf16, #tpu.memory_space<vmem>>, %arg3: memref<1x384xf32, #tpu.memory_space<vmem>>, %arg4: memref<384x128xbf16, #tpu.memory_space<vmem>>, %arg5: memref<1x128xf32, #tpu.memory_space<vmem>>, %arg6: memref<128x128xbf16, #tpu.memory_space<vmem>>, %arg7: memref<1x128xf32, #tpu.memory_space<vmem>>, %arg8: memref<2x128xf32, #tpu.memory_space<vmem>>) attributes {dimension_semantics = [#tpu.dimension_semantics<parallel>], iteration_bounds = array<i64: 1>, scalar_prefetch = 0 : i64, scratch_operands = 0 : i64, tpu.core_type = #tpu.core_type<tc>, window_params = [{transform_indices = @transform_0, window_bounds = array<i64: 2, 784>}, {pipeline_mode = #tpu.pipeline_mode<synchronous>, transform_indices = @transform_1, window_bounds = array<i64: 784, 384>}, {pipeline_mode = #tpu.pipeline_mode<synchronous>, transform_indices = @transform_2, window_bounds = array<i64: 1, 384>}, {pipeline_mode = #tpu.pipeline_mode<synchronous>, transform_indices = @transform_3, window_bounds = array<i64: 384, 128>}, {pipeline_mode = #tpu.pipeline_mode<synchronous>, transform_indices = @transform_4, window_bounds = array<i64: 1, 128>}, {pipeline_mode = #tpu.pipeline_mode<synchronous>, transform_indices = @transform_5, window_bounds = array<i64: 128, 128>}, {pipeline_mode = #tpu.pipeline_mode<synchronous>, transform_indices = @transform_6, window_bounds = array<i64: 1, 128>}, {transform_indices = @transform_7, window_bounds = array<i64: 2, 128>}]} {
    %c0 = arith.constant 0 : index
    %c0_0 = arith.constant 0 : index
    %0 = vector.load %arg1[%c0, %c0_0] : memref<2x784xf32, #tpu.memory_space<vmem>>, vector<2x784xf32>
    %1 = arith.truncf %0 : vector<2x784xf32> to vector<2x784xbf16>
    %c0_1 = arith.constant 0 : index
    %c0_2 = arith.constant 0 : index
    %2 = vector.load %arg2[%c0_1, %c0_2] : memref<784x384xbf16, #tpu.memory_space<vmem>>, vector<784x384xbf16>
    %cst = arith.constant dense<0.000000e+00> : vector<2x384xf32>
    %3 = tpu.matmul %1, %2, %cst {dimension_numbers = #tpu.dot_dimension_numbers<[1], [0], [0], [1], [0, 0, 1, 1], [], []>} : vector<2x784xbf16>, vector<784x384xbf16>, vector<2x384xf32> -> vector<2x384xf32>
    %c0_3 = arith.constant 0 : index
    %c0_4 = arith.constant 0 : index
    %4 = vector.load %arg3[%c0_3, %c0_4] : memref<1x384xf32, #tpu.memory_space<vmem>>, vector<1x384xf32>
    %5 = vector.broadcast %4 : vector<1x384xf32> to vector<2x384xf32>
    %6 = arith.addf %3, %5 : vector<2x384xf32>
    %cst_5 = arith.constant 0.000000e+00 : f32
    %7 = vector.broadcast %cst_5 : f32 to vector<2x384xf32>
    %8 = arith.maximumf %6, %7 : vector<2x384xf32>
    %9 = arith.truncf %8 : vector<2x384xf32> to vector<2x384xbf16>
    %c0_6 = arith.constant 0 : index
    %c0_7 = arith.constant 0 : index
    %10 = vector.load %arg4[%c0_6, %c0_7] : memref<384x128xbf16, #tpu.memory_space<vmem>>, vector<384x128xbf16>
    %cst_8 = arith.constant dense<0.000000e+00> : vector<2x128xf32>
    %11 = tpu.matmul %9, %10, %cst_8 {dimension_numbers = #tpu.dot_dimension_numbers<[1], [0], [0], [1], [0, 0, 1, 1], [], []>} : vector<2x384xbf16>, vector<384x128xbf16>, vector<2x128xf32> -> vector<2x128xf32>
    %c0_9 = arith.constant 0 : index
    %c0_10 = arith.constant 0 : index
    %12 = vector.load %arg5[%c0_9, %c0_10] : memref<1x128xf32, #tpu.memory_space<vmem>>, vector<1x128xf32>
    %13 = vector.broadcast %12 : vector<1x128xf32> to vector<2x128xf32>
    %14 = arith.addf %11, %13 : vector<2x128xf32>
    %cst_11 = arith.constant 0.000000e+00 : f32
    %15 = vector.broadcast %cst_11 : f32 to vector<2x128xf32>
    %16 = arith.maximumf %14, %15 : vector<2x128xf32>
    %17 = arith.truncf %16 : vector<2x128xf32> to vector<2x128xbf16>
    %c0_12 = arith.constant 0 : index
    %c0_13 = arith.constant 0 : index
    %18 = vector.load %arg6[%c0_12, %c0_13] : memref<128x128xbf16, #tpu.memory_space<vmem>>, vector<128x128xbf16>
    %cst_14 = arith.constant dense<0.000000e+00> : vector<2x128xf32>
    %19 = tpu.matmul %17, %18, %cst_14 {dimension_numbers = #tpu.dot_dimension_numbers<[1], [0], [0], [1], [0, 0, 1, 1], [], []>} : vector<2x128xbf16>, vector<128x128xbf16>, vector<2x128xf32> -> vector<2x128xf32>
    %c0_15 = arith.constant 0 : index
    %c0_16 = arith.constant 0 : index
    %20 = vector.load %arg7[%c0_15, %c0_16] : memref<1x128xf32, #tpu.memory_space<vmem>>, vector<1x128xf32>
    %21 = vector.broadcast %20 : vector<1x128xf32> to vector<2x128xf32>
    %22 = arith.addf %19, %21 : vector<2x128xf32>
    %c0_17 = arith.constant 0 : index
    %c0_18 = arith.constant 0 : index
    %23 = vector.load %arg8[%c0_17, %c0_18] : memref<2x128xf32, #tpu.memory_space<vmem>>, vector<2x128xf32>
    tpu.vector_store %arg8[%c0_17, %c0_18], %22 {strides = array<i32>} : memref<2x128xf32, #tpu.memory_space<vmem>>, vector<2x128xf32>,
    return
  }
  func.func @transform_0(%arg0: i32) -> (i32, i32) {
    %c0_i32 = arith.constant 0 : i32
    %c0_i32_0 = arith.constant 0 : i32
    return %arg0, %c0_i32 : i32, i32
  }
  func.func @transform_1(%arg0: i32) -> (i32, i32) {
    %c0_i32 = arith.constant 0 : i32
    %c0_i32_0 = arith.constant 0 : i32
    %c0_i32_1 = arith.constant 0 : i32
    return %c0_i32, %c0_i32_0 : i32, i32
  }
  func.func @transform_2(%arg0: i32) -> (i32, i32) {
    %c0_i32 = arith.constant 0 : i32
    %c0_i32_0 = arith.constant 0 : i32
    %c0_i32_1 = arith.constant 0 : i32
    return %c0_i32, %c0_i32_0 : i32, i32
  }
  func.func @transform_3(%arg0: i32) -> (i32, i32) {
    %c0_i32 = arith.constant 0 : i32
    %c0_i32_0 = arith.constant 0 : i32
    %c0_i32_1 = arith.constant 0 : i32
    return %c0_i32, %c0_i32_0 : i32, i32
  }
  func.func @transform_4(%arg0: i32) -> (i32, i32) {
    %c0_i32 = arith.constant 0 : i32
    %c0_i32_0 = arith.constant 0 : i32
    %c0_i32_1 = arith.constant 0 : i32
    return %c0_i32, %c0_i32_0 : i32, i32
  }
  func.func @transform_5(%arg0: i32) -> (i32, i32) {
    %c0_i32 = arith.constant 0 : i32
    %c0_i32_0 = arith.constant 0 : i32
    %c0_i32_1 = arith.constant 0 : i32
    return %c0_i32, %c0_i32_0 : i32, i32
  }
  func.func @transform_6(%arg0: i32) -> (i32, i32) {
    %c0_i32 = arith.constant 0 : i32
    %c0_i32_0 = arith.constant 0 : i32
    %c0_i32_1 = arith.constant 0 : i32
    return %c0_i32, %c0_i32_0 : i32, i32
  }
  func.func @transform_7(%arg0: i32) -> (i32, i32) {
    %c0_i32 = arith.constant 0 : i32
    %c0_i32_0 = arith.constant 0 : i32
    return %arg0, %c0_i32 : i32, i32
  }
}

</mosaic_0001>

<llo_original>
// kernel: lenet300_forward.1
$region0: #{lenet300_forward.1}
  #allocation0 [shape = 'u32[]', space=smem, size = 0x4, offset = 0x4, fixed_abs, tag = 'smem constant byte address 0x4 - core index']
  #allocation1 [shape = 'u32[72,128]{1,0:T(1,128)}', space=vmem, size = 0x9000, scoped, tag = 'internal scratch']
  %s0 = inlined_call_operand.vmem [shape: f32[2,784], index: 0, kind: input, shape index: {}]
  %s1 = inlined_call_operand.hbm [shape: bf16[784,384], index: 1, kind: input, shape index: {}]
  %s2 = inlined_call_operand.vmem [shape: f32[1,384], index: 2, kind: input, shape index: {}]
  %s3 = inlined_call_operand.vmem [shape: bf16[384,128], index: 3, kind: input, shape index: {}]
  %s4 = inlined_call_operand.vmem [shape: f32[1,128], index: 4, kind: input, shape index: {}]
  %s5 = inlined_call_operand.hbm [shape: bf16[128,128], index: 5, kind: input, shape index: {}]
  %s6 = inlined_call_operand.vmem [shape: f32[1,128], index: 6, kind: input, shape index: {}]
  %s7 = inlined_call_operand.hbm [shape: f32[2,128], index: 7, kind: output, shape index: {}]
  %s8 = sld [smem:[#allocation0]]
  $region46: #{lenet300_forward.1} parent=0
    _
  %s10 = ssub.s32 1, %s8
  %s11 = scalar_select 0, %s10, %s8
  $region1: #{lenet300_forward.1} parent=0
    #allocation2 [shape = 'u8[602112]{0}', space=vmem, size = 0x93000, scoped, tag = 'input window, operand 1, single buffered']
    #allocation3 [shape = 's32[1]{0}', space=sflag, size = 0x4, scoped, tag = 'scoped memory for lenet300_forward.1']
    #allocation4 [shape = 's32[1]{0}', space=sflag, size = 0x4, scoped, tag = 'scoped memory for lenet300_forward.1']
    #allocation5 [shape = 'u8[32768]{0}', space=vmem, size = 0x8000, scoped, tag = 'input window, operand 5, single buffered']
    #allocation6 [shape = 's32[1]{0}', space=sflag, size = 0x4, scoped, tag = 'scoped memory for lenet300_forward.1']
    #allocation7 [shape = 'u8[1024]{0}', space=vmem, size = 0x400, scoped, tag = 'output window, operand 0, single buffered']
    %12 = vsyncpa [#allocation3], 0
    %13 = vsyncpa [#allocation6], 0
    %14 = vsyncpa [#allocation4], 0
    // Predicated region
    $region2: #{lenet300_forward.1} parent=1 // pred_check
      _
    $region3: #{lenet300_forward.1} parent=1 // pred_check_branch
      %16 = sbr.rel (0) target = $region5
    $region4: #{lenet300_forward.1} parent=1 // pred_region
      _
    $region5: #{lenet300_forward.1} parent=1 // pred_fallthru
      _
    // Predicated region
    $region6: #{lenet300_forward.1} parent=1 // pred_check
      _
    $region7: #{lenet300_forward.1} parent=1 // pred_check_branch
      %18 = sbr.rel (0) target = $region9
    $region8: #{lenet300_forward.1} parent=1 // pred_region
      %20 = vsyncadd [#allocation3], 0
      %s21 = sshll.u32 %s1, 4
      %s22 = int_to_ptr.hbm [resolvable:$true] %s21
      %s23 = sshll.u32 [#allocation2], 4
      %s24 = int_to_ptr.vmem [resolvable:$true] %s23
      %29 = dma.hbm_to_vmem [thread:$0]  %s22, 18816, %s24, [#allocation3], 192, 192, 12
    $region9: #{lenet300_forward.1} parent=1 // pred_fallthru
      _
    // Predicated region
    $region10: #{lenet300_forward.1} parent=1 // pred_check
      _
    $region11: #{lenet300_forward.1} parent=1 // pred_check_branch
      %31 = sbr.rel (0) target = $region13
    $region12: #{lenet300_forward.1} parent=1 // pred_region
      _
    $region13: #{lenet300_forward.1} parent=1 // pred_fallthru
      _
    // Predicated region
    $region14: #{lenet300_forward.1} parent=1 // pred_check
      _
    $region15: #{lenet300_forward.1} parent=1 // pred_check_branch
      %33 = sbr.rel (0) target = $region17
    $region16: #{lenet300_forward.1} parent=1 // pred_region
      _
    $region17: #{lenet300_forward.1} parent=1 // pred_fallthru
      _
    // Predicated region
    $region18: #{lenet300_forward.1} parent=1 // pred_check
      _
    $region19: #{lenet300_forward.1} parent=1 // pred_check_branch
      %35 = sbr.rel (0) target = $region21
    $region20: #{lenet300_forward.1} parent=1 // pred_region
      _
    $region21: #{lenet300_forward.1} parent=1 // pred_fallthru
      _
    // Predicated region
    $region22: #{lenet300_forward.1} parent=1 // pred_check
      _
    $region23: #{lenet300_forward.1} parent=1 // pred_check_branch
      %37 = sbr.rel (0) target = $region25
    $region24: #{lenet300_forward.1} parent=1 // pred_region
      %39 = vsyncadd [#allocation6], 0
      %s40 = sshll.u32 %s5, 4
      %s41 = int_to_ptr.hbm [resolvable:$true] %s40
      %s42 = sshll.u32 [#allocation5], 4
      %s43 = int_to_ptr.vmem [resolvable:$true] %s42
      %48 = dma.hbm_to_vmem [thread:$0]  %s41, 1024, %s43, [#allocation6], 64, 64, 4
    $region25: #{lenet300_forward.1} parent=1 // pred_fallthru
      _
    // Predicated region
    $region26: #{lenet300_forward.1} parent=1 // pred_check
      _
    $region27: #{lenet300_forward.1} parent=1 // pred_check_branch
      %50 = sbr.rel (0) target = $region29
    $region28: #{lenet300_forward.1} parent=1 // pred_region
      _
    $region29: #{lenet300_forward.1} parent=1 // pred_fallthru
      _
    // Predicated region
    $region30: #{lenet300_forward.1} parent=1 // pred_check
      _
    $region31: #{lenet300_forward.1} parent=1 // pred_check_branch
      %52 = sbr.rel (0) target = $region33
    $region32: #{lenet300_forward.1} parent=1 // pred_region
      %54 = dma.done [#allocation3], 18816
    $region33: #{lenet300_forward.1} parent=1 // pred_fallthru
      _
    // Predicated region
    $region34: #{lenet300_forward.1} parent=1 // pred_check
      _
    $region35: #{lenet300_forward.1} parent=1 // pred_check_branch
      %56 = sbr.rel (0) target = $region37
    $region36: #{lenet300_forward.1} parent=1 // pred_region
      %58 = dma.done [#allocation6], 1024
    $region37: #{lenet300_forward.1} parent=1 // pred_fallthru
      _
    %v60 = vld [vmem:[%s0] sm:$0xff]
    %v61 = vld [vmem:[%s0 + $0x8] sm:$0x3f]
    %64 = vst [vmem:[#allocation1] ss:$4 sm:$0xff] %v60
    %s65 = scalar_lea.vmem [#allocation1], 32
    %66 = vst [vmem:[%s65] ss:$4 sm:$0xff] %v61
    %v67 = vld.sshfl [vmem:[#allocation1] sm:$0xff pattern:$0x73625140]
    %v68 = vld.sshfl [vmem:[#allocation1 + $0x8] sm:$0xff pattern:$0x73625140]
    %v69 = vld.sshfl [vmem:[#allocation1 + $0x10] sm:$0xff pattern:$0x73625140]
    %v70 = vld.sshfl [vmem:[#allocation1 + $0x18] sm:$0xff pattern:$0x73625140]
    %v71 = vld.sshfl [vmem:[#allocation1 + $0x20] sm:$0xff pattern:$0x73625140]
    %v72 = vld.sshfl [vmem:[#allocation1 + $0x28] sm:$0xff pattern:$0x73625140]
    %v73 = vld.sshfl [vmem:[#allocation1 + $0x30] sm:$0xff pattern:$0x73625140]
    %v81 = vpack.c.bf16 %v67, %v67
    %v82 = vpack.c.bf16 %v68, %v68
    %v83 = vpack.c.bf16 %v69, %v69
    %v84 = vpack.c.bf16 %v70, %v70
    %v85 = vpack.c.bf16 %v71, %v71
    %v86 = vpack.c.bf16 %v72, %v72
    %v87 = vpack.c.bf16 %v73, %v73
    %v88 = vld [vmem:[#allocation2] sm:$0xff]
    %v89 = vld [vmem:[#allocation2 + $0x8] sm:$0xf]
    %v90 = vld [vmem:[#allocation2 + $0xc] sm:$0xff]
    %v91 = vld [vmem:[#allocation2 + $0x14] sm:$0xf]
    %v92 = vld [vmem:[#allocation2 + $0x18] sm:$0xff]
    %v93 = vld [vmem:[#allocation2 + $0x20] sm:$0xf]
    %v94 = vld [vmem:[#allocation2 + $0x24] sm:$0xff]
    %v95 = vld [vmem:[#allocation2 + $0x2c] sm:$0xf]
    %v96 = vld [vmem:[#allocation2 + $0x30] sm:$0xff]
    %v97 = vld [vmem:[#allocation2 + $0x38] sm:$0xf]
    %v98 = vld [vmem:[#allocation2 + $0x3c] sm:$0xff]
    %v99 = vld [vmem:[#allocation2 + $0x44] sm:$0xf]
    %v100 = vld [vmem:[#allocation2 + $0x48] sm:$0xff]
    %v101 = vld [vmem:[#allocation2 + $0x50] sm:$0xf]
    %v102 = vld [vmem:[#allocation2 + $0x54] sm:$0xff]
    %v103 = vld [vmem:[#allocation2 + $0x5c] sm:$0xf]
    %v104 = vld [vmem:[#allocation2 + $0x60] sm:$0xff]
    %v105 = vld [vmem:[#allocation2 + $0x68] sm:$0xf]
    %v106 = vld [vmem:[#allocation2 + $0x6c] sm:$0xff]
    %v107 = vld [vmem:[#allocation2 + $0x74] sm:$0xf]
    %v108 = vld [vmem:[#allocation2 + $0x78] sm:$0xff]
    %v109 = vld [vmem:[#allocation2 + $0x80] sm:$0xf]
    %v110 = vld [vmem:[#allocation2 + $0x84] sm:$0xff]
    %v111 = vld [vmem:[#allocation2 + $0x8c] sm:$0xf]
    %v112 = vld [vmem:[#allocation2 + $0x90] sm:$0xff]
    %v113 = vld [vmem:[#allocation2 + $0x98] sm:$0xf]
    %v114 = vld [vmem:[#allocation2 + $0x9c] sm:$0xff]
    %v115 = vld [vmem:[#allocation2 + $0xa4] sm:$0xf]
    %v116 = vld [vmem:[#allocation2 + $0xa8] sm:$0xff]
    %v117 = vld [vmem:[#allocation2 + $0xb0] sm:$0xf]
    %v118 = vld [vmem:[#allocation2 + $0xb4] sm:$0xff]
    %v119 = vld [vmem:[#allocation2 + $0xbc] sm:$0xf]
    %v120 = vld [vmem:[#allocation2 + $0xc0] sm:$0xff]
    %v121 = vld [vmem:[#allocation2 + $0xc8] sm:$0xf]
    %v122 = vld [vmem:[#allocation2 + $0xcc] sm:$0xff]
    %v123 = vld [vmem:[#allocation2 + $0xd4] sm:$0xf]
    %v124 = vld [vmem:[#allocation2 + $0xd8] sm:$0xff]
    %v125 = vld [vmem:[#allocation2 + $0xe0] sm:$0xf]
    %v126 = vld [vmem:[#allocation2 + $0xe4] sm:$0xff]
    %v127 = vld [vmem:[#allocation2 + $0xec] sm:$0xf]
    %v128 = vld [vmem:[#allocation2 + $0xf0] sm:$0xff]
    %v129 = vld [vmem:[#allocation2 + $0xf8] sm:$0xf]
    %v130 = vld [vmem:[#allocation2 + $0xfc] sm:$0xff]
    %v131 = vld [vmem:[#allocation2 + $0x104] sm:$0xf]
    %v132 = vld [vmem:[#allocation2 + $0x108] sm:$0xff]
    %v133 = vld [vmem:[#allocation2 + $0x110] sm:$0xf]
    %v134 = vld [vmem:[#allocation2 + $0x114] sm:$0xff]
    %v135 = vld [vmem:[#allocation2 + $0x11c] sm:$0xf]
    %v136 = vld [vmem:[#allocation2 + $0x120] sm:$0xff]
    %v137 = vld [vmem:[#allocation2 + $0x128] sm:$0xf]
    %v138 = vld [vmem:[#allocation2 + $0x12c] sm:$0xff]
    %v139 = vld [vmem:[#allocation2 + $0x134] sm:$0xf]
    %v140 = vld [vmem:[#allocation2 + $0x138] sm:$0xff]
    %v141 = vld [vmem:[#allocation2 + $0x140] sm:$0xf]
    %v142 = vld [vmem:[#allocation2 + $0x144] sm:$0xff]
    %v143 = vld [vmem:[#allocation2 + $0x14c] sm:$0xf]
    %v144 = vld [vmem:[#allocation2 + $0x150] sm:$0xff]
    %v145 = vld [vmem:[#allocation2 + $0x158] sm:$0xf]
    %v146 = vld [vmem:[#allocation2 + $0x15c] sm:$0xff]
    %v147 = vld [vmem:[#allocation2 + $0x164] sm:$0xf]
    %v148 = vld [vmem:[#allocation2 + $0x168] sm:$0xff]
    %v149 = vld [vmem:[#allocation2 + $0x170] sm:$0xf]
    %v150 = vld [vmem:[#allocation2 + $0x174] sm:$0xff]
    %v151 = vld [vmem:[#allocation2 + $0x17c] sm:$0xf]
    %v152 = vld [vmem:[#allocation2 + $0x180] sm:$0xff]
    %v153 = vld [vmem:[#allocation2 + $0x188] sm:$0xf]
    %v154 = vld [vmem:[#allocation2 + $0x18c] sm:$0xff]
    %v155 = vld [vmem:[#allocation2 + $0x194] sm:$0xf]
    %v156 = vld [vmem:[#allocation2 + $0x198] sm:$0xff]
    %v157 = vld [vmem:[#allocation2 + $0x1a0] sm:$0xf]
    %v158 = vld [vmem:[#allocation2 + $0x1a4] sm:$0xff]
    %v159 = vld [vmem:[#allocation2 + $0x1ac] sm:$0xf]
    %v160 = vld [vmem:[#allocation2 + $0x1b0] sm:$0xff]
    %v161 = vld [vmem:[#allocation2 + $0x1b8] sm:$0xf]
    %v162 = vld [vmem:[#allocation2 + $0x1bc] sm:$0xff]
    %v163 = vld [vmem:[#allocation2 + $0x1c4] sm:$0xf]
    %v164 = vld [vmem:[#allocation2 + $0x1c8] sm:$0xff]
    %v165 = vld [vmem:[#allocation2 + $0x1d0] sm:$0xf]
    %v166 = vld [vmem:[#allocation2 + $0x1d4] sm:$0xff]
    %v167 = vld [vmem:[#allocation2 + $0x1dc] sm:$0xf]
    %v168 = vld [vmem:[#allocation2 + $0x1e0] sm:$0xff]
    %v169 = vld [vmem:[#allocation2 + $0x1e8] sm:$0xf]
    %v170 = vld [vmem:[#allocation2 + $0x1ec] sm:$0xff]
    %v171 = vld [vmem:[#allocation2 + $0x1f4] sm:$0xf]
    %v172 = vld [vmem:[#allocation2 + $0x1f8] sm:$0xff]
    %v173 = vld [vmem:[#allocation2 + $0x200] sm:$0xf]
    %v174 = vld [vmem:[#allocation2 + $0x204] sm:$0xff]
    %v175 = vld [vmem:[#allocation2 + $0x20c] sm:$0xf]
    %v176 = vld [vmem:[#allocation2 + $0x210] sm:$0xff]
    %v177 = vld [vmem:[#allocation2 + $0x218] sm:$0xf]
    %v178 = vld [vmem:[#allocation2 + $0x21c] sm:$0xff]
    %v179 = vld [vmem:[#allocation2 + $0x224] sm:$0xf]
    %v180 = vld [vmem:[#allocation2 + $0x228] sm:$0xff]
    %v181 = vld [vmem:[#allocation2 + $0x230] sm:$0xf]
    %v182 = vld [vmem:[#allocation2 + $0x234] sm:$0xff]
    %v183 = vld [vmem:[#allocation2 + $0x23c] sm:$0xf]
    %v184 = vld [vmem:[#allocation2 + $0x240] sm:$0xff]
    %v185 = vld [vmem:[#allocation2 + $0x248] sm:$0xf]
    %v186 = vld [vmem:[#allocation2 + $0x24c] sm:$0xff]
    %v187 = vld [vmem:[#allocation2 + $0x254] sm:$0xf]
    %v188 = vld [vmem:[#allocation2 + $0x258] sm:$0xff]
    %v189 = vld [vmem:[#allocation2 + $0x260] sm:$0xf]
    %v190 = vld [vmem:[#allocation2 + $0x264] sm:$0xff]
    %v191 = vld [vmem:[#allocation2 + $0x26c] sm:$0xf]
    %v192 = vld [vmem:[#allocation2 + $0x270] sm:$0xff]
    %v193 = vld [vmem:[#allocation2 + $0x278] sm:$0xf]
    %v194 = vld [vmem:[#allocation2 + $0x27c] sm:$0xff]
    %v195 = vld [vmem:[#allocation2 + $0x284] sm:$0xf]
    %v196 = vld [vmem:[#allocation2 + $0x288] sm:$0xff]
    %v197 = vld [vmem:[#allocation2 + $0x290] sm:$0xf]
    %v198 = vld [vmem:[#allocation2 + $0x294] sm:$0xff]
    %v199 = vld [vmem:[#allocation2 + $0x29c] sm:$0xf]
    %v200 = vld [vmem:[#allocation2 + $0x2a0] sm:$0xff]
    %v201 = vld [vmem:[#allocation2 + $0x2a8] sm:$0xf]
    %v202 = vld [vmem:[#allocation2 + $0x2ac] sm:$0xff]
    %v203 = vld [vmem:[#allocation2 + $0x2b4] sm:$0xf]
    %v204 = vld [vmem:[#allocation2 + $0x2b8] sm:$0xff]
    %v205 = vld [vmem:[#allocation2 + $0x2c0] sm:$0xf]
    %v206 = vld [vmem:[#allocation2 + $0x2c4] sm:$0xff]
    %v207 = vld [vmem:[#allocation2 + $0x2cc] sm:$0xf]
    %v208 = vld [vmem:[#allocation2 + $0x2d0] sm:$0xff]
    %v209 = vld [vmem:[#allocation2 + $0x2d8] sm:$0xf]
    %v210 = vld [vmem:[#allocation2 + $0x2dc] sm:$0xff]
    %v211 = vld [vmem:[#allocation2 + $0x2e4] sm:$0xf]
    %v212 = vld [vmem:[#allocation2 + $0x2e8] sm:$0xff]
    %v213 = vld [vmem:[#allocation2 + $0x2f0] sm:$0xf]
    %v214 = vld [vmem:[#allocation2 + $0x2f4] sm:$0xff]
    %v215 = vld [vmem:[#allocation2 + $0x2fc] sm:$0xf]
    %v216 = vld [vmem:[#allocation2 + $0x300] sm:$0xff]
    %v217 = vld [vmem:[#allocation2 + $0x308] sm:$0xf]
    %v218 = vld [vmem:[#allocation2 + $0x30c] sm:$0xff]
    %v219 = vld [vmem:[#allocation2 + $0x314] sm:$0xf]
    %v220 = vld [vmem:[#allocation2 + $0x318] sm:$0xff]
    %v221 = vld [vmem:[#allocation2 + $0x320] sm:$0xf]
    %v222 = vld [vmem:[#allocation2 + $0x324] sm:$0xff]
    %v223 = vld [vmem:[#allocation2 + $0x32c] sm:$0xf]
    %v224 = vld [vmem:[#allocation2 + $0x330] sm:$0xff]
    %v225 = vld [vmem:[#allocation2 + $0x338] sm:$0xf]
    %v226 = vld [vmem:[#allocation2 + $0x33c] sm:$0xff]
    %v227 = vld [vmem:[#allocation2 + $0x344] sm:$0xf]
    %v228 = vld [vmem:[#allocation2 + $0x348] sm:$0xff]
    %v229 = vld [vmem:[#allocation2 + $0x350] sm:$0xf]
    %v230 = vld [vmem:[#allocation2 + $0x354] sm:$0xff]
    %v231 = vld [vmem:[#allocation2 + $0x35c] sm:$0xf]
    %v232 = vld [vmem:[#allocation2 + $0x360] sm:$0xff]
    %v233 = vld [vmem:[#allocation2 + $0x368] sm:$0xf]
    %v234 = vld [vmem:[#allocation2 + $0x36c] sm:$0xff]
    %v235 = vld [vmem:[#allocation2 + $0x374] sm:$0xf]
    %v236 = vld [vmem:[#allocation2 + $0x378] sm:$0xff]
    %v237 = vld [vmem:[#allocation2 + $0x380] sm:$0xf]
    %v238 = vld [vmem:[#allocation2 + $0x384] sm:$0xff]
    %v239 = vld [vmem:[#allocation2 + $0x38c] sm:$0xf]
    %v240 = vld [vmem:[#allocation2 + $0x390] sm:$0xff]
    %v241 = vld [vmem:[#allocation2 + $0x398] sm:$0xf]
    %v242 = vld [vmem:[#allocation2 + $0x39c] sm:$0xff]
    %v243 = vld [vmem:[#allocation2 + $0x3a4] sm:$0xf]
    %v244 = vld [vmem:[#allocation2 + $0x3a8] sm:$0xff]
    %v245 = vld [vmem:[#allocation2 + $0x3b0] sm:$0xf]
    %v246 = vld [vmem:[#allocation2 + $0x3b4] sm:$0xff]
    %v247 = vld [vmem:[#allocation2 + $0x3bc] sm:$0xf]
    %v248 = vld [vmem:[#allocation2 + $0x3c0] sm:$0xff]
    %v249 = vld [vmem:[#allocation2 + $0x3c8] sm:$0xf]
    %v250 = vld [vmem:[#allocation2 + $0x3cc] sm:$0xff]
    %v251 = vld [vmem:[#allocation2 + $0x3d4] sm:$0xf]
    %v252 = vld [vmem:[#allocation2 + $0x3d8] sm:$0xff]
    %v253 = vld [vmem:[#allocation2 + $0x3e0] sm:$0xf]
    %v254 = vld [vmem:[#allocation2 + $0x3e4] sm:$0xff]
    %v255 = vld [vmem:[#allocation2 + $0x3ec] sm:$0xf]
    %v256 = vld [vmem:[#allocation2 + $0x3f0] sm:$0xff]
    %v257 = vld [vmem:[#allocation2 + $0x3f8] sm:$0xf]
    %v258 = vld [vmem:[#allocation2 + $0x3fc] sm:$0xff]
    %v259 = vld [vmem:[#allocation2 + $0x404] sm:$0xf]
    %v260 = vld [vmem:[#allocation2 + $0x408] sm:$0xff]
    %v261 = vld [vmem:[#allocation2 + $0x410] sm:$0xf]
    %v262 = vld [vmem:[#allocation2 + $0x414] sm:$0xff]
    %v263 = vld [vmem:[#allocation2 + $0x41c] sm:$0xf]
    %v264 = vld [vmem:[#allocation2 + $0x420] sm:$0xff]
    %v265 = vld [vmem:[#allocation2 + $0x428] sm:$0xf]
    %v266 = vld [vmem:[#allocation2 + $0x42c] sm:$0xff]
    %v267 = vld [vmem:[#allocation2 + $0x434] sm:$0xf]
    %v268 = vld [vmem:[#allocation2 + $0x438] sm:$0xff]
    %v269 = vld [vmem:[#allocation2 + $0x440] sm:$0xf]
    %v270 = vld [vmem:[#allocation2 + $0x444] sm:$0xff]
    %v271 = vld [vmem:[#allocation2 + $0x44c] sm:$0xf]
    %v272 = vld [vmem:[#allocation2 + $0x450] sm:$0xff]
    %v273 = vld [vmem:[#allocation2 + $0x458] sm:$0xf]
    %v274 = vld [vmem:[#allocation2 + $0x45c] sm:$0xff]
    %v275 = vld [vmem:[#allocation2 + $0x464] sm:$0xf]
    %v276 = vld [vmem:[#allocation2 + $0x468] sm:$0xff]
    %v277 = vld [vmem:[#allocation2 + $0x470] sm:$0xf]
    %v278 = vld [vmem:[#allocation2 + $0x474] sm:$0xff]
    %v279 = vld [vmem:[#allocation2 + $0x47c] sm:$0xf]
    %v280 = vld [vmem:[#allocation2 + $0x480] sm:$0xff]
    %v281 = vld [vmem:[#allocation2 + $0x488] sm:$0xf]
    %v282 = vld [vmem:[#allocation2 + $0x48c] sm:$0xff]
    %v283 = vld [vmem:[#allocation2 + $0x494] sm:$0xf]
    %v284 = vld [vmem:[%s2] sm:$0x7]
    %v286 = vperm.slane %v284, 0
    %v287 = vperm.slane %v284, 1
    %v288 = vperm.slane %v284, 2
    %v488 = vunpack.c.l.b16 %v88
    %v489 = vunpack.c.h.b16 %v88
    %v490 = vunpack.c.l.b16 %v89
    %v491 = vunpack.c.l.b16 %v90
    %v492 = vunpack.c.h.b16 %v90
    %v493 = vunpack.c.l.b16 %v91
    %v494 = vunpack.c.l.b16 %v92
    %v495 = vunpack.c.h.b16 %v92
    %v496 = vunpack.c.l.b16 %v93
    %v497 = vunpack.c.l.b16 %v94
    %v498 = vunpack.c.h.b16 %v94
    %v499 = vunpack.c.l.b16 %v95
    %v500 = vunpack.c.l.b16 %v96
    %v501 = vunpack.c.h.b16 %v96
    %v502 = vunpack.c.l.b16 %v97
    %v503 = vunpack.c.l.b16 %v98
    %v504 = vunpack.c.h.b16 %v98
    %v505 = vunpack.c.l.b16 %v99
    %v506 = vunpack.c.l.b16 %v100
    %v507 = vunpack.c.h.b16 %v100
    %v508 = vunpack.c.l.b16 %v101
    %v509 = vunpack.c.l.b16 %v102
    %v510 = vunpack.c.h.b16 %v102
    %v511 = vunpack.c.l.b16 %v103
    %v512 = vunpack.c.l.b16 %v104
    %v513 = vunpack.c.h.b16 %v104
    %v514 = vunpack.c.l.b16 %v105
    %v515 = vunpack.c.l.b16 %v106
    %v516 = vunpack.c.h.b16 %v106
    %v517 = vunpack.c.l.b16 %v107
    %v518 = vunpack.c.l.b16 %v108
    %v519 = vunpack.c.h.b16 %v108
    %v520 = vunpack.c.l.b16 %v109
    %v521 = vunpack.c.l.b16 %v110
    %v522 = vunpack.c.h.b16 %v110
    %v523 = vunpack.c.l.b16 %v111
    %v524 = vunpack.c.l.b16 %v112
    %v525 = vunpack.c.h.b16 %v112
    %v526 = vunpack.c.l.b16 %v113
    %v527 = vunpack.c.l.b16 %v114
    %v528 = vunpack.c.h.b16 %v114
    %v529 = vunpack.c.l.b16 %v115
    %v530 = vunpack.c.l.b16 %v116
    %v531 = vunpack.c.h.b16 %v116
    %v532 = vunpack.c.l.b16 %v117
    %v533 = vunpack.c.l.b16 %v118
    %v534 = vunpack.c.h.b16 %v118
    %v535 = vunpack.c.l.b16 %v119
    %v536 = vunpack.c.l.b16 %v120
    %v537 = vunpack.c.h.b16 %v120
    %v538 = vunpack.c.l.b16 %v121
    %v539 = vunpack.c.l.b16 %v122
    %v540 = vunpack.c.h.b16 %v122
    %v541 = vunpack.c.l.b16 %v123
    %v542 = vunpack.c.l.b16 %v124
    %v543 = vunpack.c.h.b16 %v124
    %v544 = vunpack.c.l.b16 %v125
    %v545 = vunpack.c.l.b16 %v126
    %v546 = vunpack.c.h.b16 %v126
    %v547 = vunpack.c.l.b16 %v127
    %v548 = vunpack.c.l.b16 %v128
    %v549 = vunpack.c.h.b16 %v128
    %v550 = vunpack.c.l.b16 %v129
    %v551 = vunpack.c.l.b16 %v130
    %v552 = vunpack.c.h.b16 %v130
    %v553 = vunpack.c.l.b16 %v131
    %v554 = vunpack.c.l.b16 %v132
    %v555 = vunpack.c.h.b16 %v132
    %v556 = vunpack.c.l.b16 %v133
    %v557 = vunpack.c.l.b16 %v134
    %v558 = vunpack.c.h.b16 %v134
    %v559 = vunpack.c.l.b16 %v135
    %v560 = vunpack.c.l.b16 %v136
    %v561 = vunpack.c.h.b16 %v136
    %v562 = vunpack.c.l.b16 %v137
    %v563 = vunpack.c.l.b16 %v138
    %v564 = vunpack.c.h.b16 %v138
    %v565 = vunpack.c.l.b16 %v139
    %v566 = vunpack.c.l.b16 %v140
    %v567 = vunpack.c.h.b16 %v140
    %v568 = vunpack.c.l.b16 %v141
    %v569 = vunpack.c.l.b16 %v142
    %v570 = vunpack.c.h.b16 %v142
    %v571 = vunpack.c.l.b16 %v143
    %v572 = vunpack.c.l.b16 %v144
    %v573 = vunpack.c.h.b16 %v144
    %v574 = vunpack.c.l.b16 %v145
    %v575 = vunpack.c.l.b16 %v146
    %v576 = vunpack.c.h.b16 %v146
    %v577 = vunpack.c.l.b16 %v147
    %v578 = vunpack.c.l.b16 %v148
    %v579 = vunpack.c.h.b16 %v148
    %v580 = vunpack.c.l.b16 %v149
    %v581 = vunpack.c.l.b16 %v150
    %v582 = vunpack.c.h.b16 %v150
    %v583 = vunpack.c.l.b16 %v151
    %v584 = vunpack.c.l.b16 %v152
    %v585 = vunpack.c.h.b16 %v152
    %v586 = vunpack.c.l.b16 %v153
    %v587 = vunpack.c.l.b16 %v154
    %v588 = vunpack.c.h.b16 %v154
    %v589 = vunpack.c.l.b16 %v155
    %v590 = vunpack.c.l.b16 %v156
    %v591 = vunpack.c.h.b16 %v156
    %v592 = vunpack.c.l.b16 %v157
    %v593 = vunpack.c.l.b16 %v158
    %v594 = vunpack.c.h.b16 %v158
    %v595 = vunpack.c.l.b16 %v159
    %v596 = vunpack.c.l.b16 %v160
    %v597 = vunpack.c.h.b16 %v160
    %v598 = vunpack.c.l.b16 %v161
    %v599 = vunpack.c.l.b16 %v162
    %v600 = vunpack.c.h.b16 %v162
    %v601 = vunpack.c.l.b16 %v163
    %v602 = vunpack.c.l.b16 %v164
    %v603 = vunpack.c.h.b16 %v164
    %v604 = vunpack.c.l.b16 %v165
    %v605 = vunpack.c.l.b16 %v166
    %v606 = vunpack.c.h.b16 %v166
    %v607 = vunpack.c.l.b16 %v167
    %v608 = vunpack.c.l.b16 %v168
    %v609 = vunpack.c.h.b16 %v168
    %v610 = vunpack.c.l.b16 %v169
    %v611 = vunpack.c.l.b16 %v170
    %v612 = vunpack.c.h.b16 %v170
    %v613 = vunpack.c.l.b16 %v171
    %v614 = vunpack.c.l.b16 %v172
    %v615 = vunpack.c.h.b16 %v172
    %v616 = vunpack.c.l.b16 %v173
    %v617 = vunpack.c.l.b16 %v174
    %v618 = vunpack.c.h.b16 %v174
    %v619 = vunpack.c.l.b16 %v175
    %v620 = vunpack.c.l.b16 %v176
    %v621 = vunpack.c.h.b16 %v176
    %v622 = vunpack.c.l.b16 %v177
    %v623 = vunpack.c.l.b16 %v178
    %v624 = vunpack.c.h.b16 %v178
    %v625 = vunpack.c.l.b16 %v179
    %v626 = vunpack.c.l.b16 %v180
    %v627 = vunpack.c.h.b16 %v180
    %v628 = vunpack.c.l.b16 %v181
    %v629 = vunpack.c.l.b16 %v182
    %v630 = vunpack.c.h.b16 %v182
    %v631 = vunpack.c.l.b16 %v183
    %v632 = vunpack.c.l.b16 %v184
    %v633 = vunpack.c.h.b16 %v184
    %v634 = vunpack.c.l.b16 %v185
    %v635 = vunpack.c.l.b16 %v186
    %v636 = vunpack.c.h.b16 %v186
    %v637 = vunpack.c.l.b16 %v187
    %v638 = vunpack.c.l.b16 %v188
    %v639 = vunpack.c.h.b16 %v188
    %v640 = vunpack.c.l.b16 %v189
    %v641 = vunpack.c.l.b16 %v190
    %v642 = vunpack.c.h.b16 %v190
    %v643 = vunpack.c.l.b16 %v191
    %v644 = vunpack.c.l.b16 %v192
    %v645 = vunpack.c.h.b16 %v192
    %v646 = vunpack.c.l.b16 %v193
    %v647 = vunpack.c.l.b16 %v194
    %v648 = vunpack.c.h.b16 %v194
    %v649 = vunpack.c.l.b16 %v195
    %v650 = vunpack.c.l.b16 %v196
    %v651 = vunpack.c.h.b16 %v196
    %v652 = vunpack.c.l.b16 %v197
    %v653 = vunpack.c.l.b16 %v198
    %v654 = vunpack.c.h.b16 %v198
    %v655 = vunpack.c.l.b16 %v199
    %v656 = vunpack.c.l.b16 %v200
    %v657 = vunpack.c.h.b16 %v200
    %v658 = vunpack.c.l.b16 %v201
    %v659 = vunpack.c.l.b16 %v202
    %v660 = vunpack.c.h.b16 %v202
    %v661 = vunpack.c.l.b16 %v203
    %v662 = vunpack.c.l.b16 %v204
    %v663 = vunpack.c.h.b16 %v204
    %v664 = vunpack.c.l.b16 %v205
    %v665 = vunpack.c.l.b16 %v206
    %v666 = vunpack.c.h.b16 %v206
    %v667 = vunpack.c.l.b16 %v207
    %v668 = vunpack.c.l.b16 %v208
    %v669 = vunpack.c.h.b16 %v208
    %v670 = vunpack.c.l.b16 %v209
    %v671 = vunpack.c.l.b16 %v210
    %v672 = vunpack.c.h.b16 %v210
    %v673 = vunpack.c.l.b16 %v211
    %v674 = vunpack.c.l.b16 %v212
    %v675 = vunpack.c.h.b16 %v212
    %v676 = vunpack.c.l.b16 %v213
    %v677 = vunpack.c.l.b16 %v214
    %v678 = vunpack.c.h.b16 %v214
    %v679 = vunpack.c.l.b16 %v215
    %v680 = vunpack.c.l.b16 %v216
    %v681 = vunpack.c.h.b16 %v216
    %v682 = vunpack.c.l.b16 %v217
    %v683 = vunpack.c.l.b16 %v218
    %v684 = vunpack.c.h.b16 %v218
    %v685 = vunpack.c.l.b16 %v219
    %v686 = vunpack.c.l.b16 %v220
    %v687 = vunpack.c.h.b16 %v220
    %v688 = vunpack.c.l.b16 %v221
    %v689 = vunpack.c.l.b16 %v222
    %v690 = vunpack.c.h.b16 %v222
    %v691 = vunpack.c.l.b16 %v223
    %v692 = vunpack.c.l.b16 %v224
    %v693 = vunpack.c.h.b16 %v224
    %v694 = vunpack.c.l.b16 %v225
    %v695 = vunpack.c.l.b16 %v226
    %v696 = vunpack.c.h.b16 %v226
    %v697 = vunpack.c.l.b16 %v227
    %v698 = vunpack.c.l.b16 %v228
    %v699 = vunpack.c.h.b16 %v228
    %v700 = vunpack.c.l.b16 %v229
    %v701 = vunpack.c.l.b16 %v230
    %v702 = vunpack.c.h.b16 %v230
    %v703 = vunpack.c.l.b16 %v231
    %v704 = vunpack.c.l.b16 %v232
    %v705 = vunpack.c.h.b16 %v232
    %v706 = vunpack.c.l.b16 %v233
    %v707 = vunpack.c.l.b16 %v234
    %v708 = vunpack.c.h.b16 %v234
    %v709 = vunpack.c.l.b16 %v235
    %v710 = vunpack.c.l.b16 %v236
    %v711 = vunpack.c.h.b16 %v236
    %v712 = vunpack.c.l.b16 %v237
    %v713 = vunpack.c.l.b16 %v238
    %v714 = vunpack.c.h.b16 %v238
    %v715 = vunpack.c.l.b16 %v239
    %v716 = vunpack.c.l.b16 %v240
    %v717 = vunpack.c.h.b16 %v240
    %v718 = vunpack.c.l.b16 %v241
    %v719 = vunpack.c.l.b16 %v242
    %v720 = vunpack.c.h.b16 %v242
    %v721 = vunpack.c.l.b16 %v243
    %v722 = vunpack.c.l.b16 %v244
    %v723 = vunpack.c.h.b16 %v244
    %v724 = vunpack.c.l.b16 %v245
    %v725 = vunpack.c.l.b16 %v246
    %v726 = vunpack.c.h.b16 %v246
    %v727 = vunpack.c.l.b16 %v247
    %v728 = vunpack.c.l.b16 %v248
    %v729 = vunpack.c.h.b16 %v248
    %v730 = vunpack.c.l.b16 %v249
    %v731 = vunpack.c.l.b16 %v250
    %v732 = vunpack.c.h.b16 %v250
    %v733 = vunpack.c.l.b16 %v251
    %v734 = vunpack.c.l.b16 %v252
    %v735 = vunpack.c.h.b16 %v252
    %v736 = vunpack.c.l.b16 %v253
    %v737 = vunpack.c.l.b16 %v254
    %v738 = vunpack.c.h.b16 %v254
    %v739 = vunpack.c.l.b16 %v255
    %v740 = vunpack.c.l.b16 %v256
    %v741 = vunpack.c.h.b16 %v256
    %v742 = vunpack.c.l.b16 %v257
    %v743 = vunpack.c.l.b16 %v258
    %v744 = vunpack.c.h.b16 %v258
    %v745 = vunpack.c.l.b16 %v259
    %v746 = vunpack.c.l.b16 %v260
    %v747 = vunpack.c.h.b16 %v260
    %v748 = vunpack.c.l.b16 %v261
    %v749 = vunpack.c.l.b16 %v262
    %v750 = vunpack.c.h.b16 %v262
    %v751 = vunpack.c.l.b16 %v263
    %v752 = vunpack.c.l.b16 %v264
    %v753 = vunpack.c.h.b16 %v264
    %v754 = vunpack.c.l.b16 %v265
    %v755 = vunpack.c.l.b16 %v266
    %v756 = vunpack.c.h.b16 %v266
    %v757 = vunpack.c.l.b16 %v267
    %v758 = vunpack.c.l.b16 %v268
    %v759 = vunpack.c.h.b16 %v268
    %v760 = vunpack.c.l.b16 %v269
    %v761 = vunpack.c.l.b16 %v270
    %v762 = vunpack.c.h.b16 %v270
    %v763 = vunpack.c.l.b16 %v271
    %v764 = vunpack.c.l.b16 %v272
    %v765 = vunpack.c.h.b16 %v272
    %v766 = vunpack.c.l.b16 %v273
    %v767 = vunpack.c.l.b16 %v274
    %v768 = vunpack.c.h.b16 %v274
    %v769 = vunpack.c.l.b16 %v275
    %v770 = vunpack.c.l.b16 %v276
    %v771 = vunpack.c.h.b16 %v276
    %v772 = vunpack.c.l.b16 %v277
    %v773 = vunpack.c.l.b16 %v278
    %v774 = vunpack.c.h.b16 %v278
    %v775 = vunpack.c.l.b16 %v279
    %v776 = vunpack.c.l.b16 %v280
    %v777 = vunpack.c.h.b16 %v280
    %v778 = vunpack.c.l.b16 %v281
    %v779 = vunpack.c.l.b16 %v282
    %v780 = vunpack.c.h.b16 %v282
    %v781 = vunpack.c.l.b16 %v283
    %v782 = vpack.c.b16 %v491, %v488
    %v783 = vpack.c.b16 %v492, %v489
    %v784 = vpack.c.b16 %v493, %v490
    %v785 = vpack.c.b16 %v497, %v494
    %v786 = vpack.c.b16 %v498, %v495
    %v787 = vpack.c.b16 %v499, %v496
    %v788 = vpack.c.b16 %v503, %v500
    %v789 = vpack.c.b16 %v504, %v501
    %v790 = vpack.c.b16 %v505, %v502
    %v791 = vpack.c.b16 %v509, %v506
    %v792 = vpack.c.b16 %v510, %v507
    %v793 = vpack.c.b16 %v511, %v508
    %v794 = vpack.c.b16 %v515, %v512
    %v795 = vpack.c.b16 %v516, %v513
    %v796 = vpack.c.b16 %v517, %v514
    %v797 = vpack.c.b16 %v521, %v518
    %v798 = vpack.c.b16 %v522, %v519
    %v799 = vpack.c.b16 %v523, %v520
    %v800 = vpack.c.b16 %v527, %v524
    %v801 = vpack.c.b16 %v528, %v525
    %v802 = vpack.c.b16 %v529, %v526
    %v803 = vpack.c.b16 %v533, %v530
    %v804 = vpack.c.b16 %v534, %v531
    %v805 = vpack.c.b16 %v535, %v532
    %v806 = vpack.c.b16 %v539, %v536
    %v807 = vpack.c.b16 %v540, %v537
    %v808 = vpack.c.b16 %v541, %v538
    %v809 = vpack.c.b16 %v545, %v542
    %v810 = vpack.c.b16 %v546, %v543
    %v811 = vpack.c.b16 %v547, %v544
    %v812 = vpack.c.b16 %v551, %v548
    %v813 = vpack.c.b16 %v552, %v549
    %v814 = vpack.c.b16 %v553, %v550
    %v815 = vpack.c.b16 %v557, %v554
    %v816 = vpack.c.b16 %v558, %v555
    %v817 = vpack.c.b16 %v559, %v556
    %v818 = vpack.c.b16 %v563, %v560
    %v819 = vpack.c.b16 %v564, %v561
    %v820 = vpack.c.b16 %v565, %v562
    %v821 = vpack.c.b16 %v569, %v566
    %v822 = vpack.c.b16 %v570, %v567
    %v823 = vpack.c.b16 %v571, %v568
    %v824 = vpack.c.b16 %v575, %v572
    %v825 = vpack.c.b16 %v576, %v573
    %v826 = vpack.c.b16 %v577, %v574
    %v827 = vpack.c.b16 %v581, %v578
    %v828 = vpack.c.b16 %v582, %v579
    %v829 = vpack.c.b16 %v583, %v580
    %v830 = vpack.c.b16 %v587, %v584
    %v831 = vpack.c.b16 %v588, %v585
    %v832 = vpack.c.b16 %v589, %v586
    %v833 = vpack.c.b16 %v593, %v590
    %v834 = vpack.c.b16 %v594, %v591
    %v835 = vpack.c.b16 %v595, %v592
    %v836 = vpack.c.b16 %v599, %v596
    %v837 = vpack.c.b16 %v600, %v597
    %v838 = vpack.c.b16 %v601, %v598
    %v839 = vpack.c.b16 %v605, %v602
    %v840 = vpack.c.b16 %v606, %v603
    %v841 = vpack.c.b16 %v607, %v604
    %v842 = vpack.c.b16 %v611, %v608
    %v843 = vpack.c.b16 %v612, %v609
    %v844 = vpack.c.b16 %v613, %v610
    %v845 = vpack.c.b16 %v617, %v614
    %v846 = vpack.c.b16 %v618, %v615
    %v847 = vpack.c.b16 %v619, %v616
    %v848 = vpack.c.b16 %v623, %v620
    %v849 = vpack.c.b16 %v624, %v621
    %v850 = vpack.c.b16 %v625, %v622
    %v851 = vpack.c.b16 %v629, %v626
    %v852 = vpack.c.b16 %v630, %v627
    %v853 = vpack.c.b16 %v631, %v628
    %v854 = vpack.c.b16 %v635, %v632
    %v855 = vpack.c.b16 %v636, %v633
    %v856 = vpack.c.b16 %v637, %v634
    %v857 = vpack.c.b16 %v641, %v638
    %v858 = vpack.c.b16 %v642, %v639
    %v859 = vpack.c.b16 %v643, %v640
    %v860 = vpack.c.b16 %v647, %v644
    %v861 = vpack.c.b16 %v648, %v645
    %v862 = vpack.c.b16 %v649, %v646
    %v863 = vpack.c.b16 %v653, %v650
    %v864 = vpack.c.b16 %v654, %v651
    %v865 = vpack.c.b16 %v655, %v652
    %v866 = vpack.c.b16 %v659, %v656
    %v867 = vpack.c.b16 %v660, %v657
    %v868 = vpack.c.b16 %v661, %v658
    %v869 = vpack.c.b16 %v665, %v662
    %v870 = vpack.c.b16 %v666, %v663
    %v871 = vpack.c.b16 %v667, %v664
    %v872 = vpack.c.b16 %v671, %v668
    %v873 = vpack.c.b16 %v672, %v669
    %v874 = vpack.c.b16 %v673, %v670
    %v875 = vpack.c.b16 %v677, %v674
    %v876 = vpack.c.b16 %v678, %v675
    %v877 = vpack.c.b16 %v679, %v676
    %v878 = vpack.c.b16 %v683, %v680
    %v879 = vpack.c.b16 %v684, %v681
    %v880 = vpack.c.b16 %v685, %v682
    %v881 = vpack.c.b16 %v689, %v686
    %v882 = vpack.c.b16 %v690, %v687
    %v883 = vpack.c.b16 %v691, %v688
    %v884 = vpack.c.b16 %v695, %v692
    %v885 = vpack.c.b16 %v696, %v693
    %v886 = vpack.c.b16 %v697, %v694
    %v887 = vpack.c.b16 %v701, %v698
    %v888 = vpack.c.b16 %v702, %v699
    %v889 = vpack.c.b16 %v703, %v700
    %v890 = vpack.c.b16 %v707, %v704
    %v891 = vpack.c.b16 %v708, %v705
    %v892 = vpack.c.b16 %v709, %v706
    %v893 = vpack.c.b16 %v713, %v710
    %v894 = vpack.c.b16 %v714, %v711
    %v895 = vpack.c.b16 %v715, %v712
    %v896 = vpack.c.b16 %v719, %v716
    %v897 = vpack.c.b16 %v720, %v717
    %v898 = vpack.c.b16 %v721, %v718
    %v899 = vpack.c.b16 %v725, %v722
    %v900 = vpack.c.b16 %v726, %v723
    %v901 = vpack.c.b16 %v727, %v724
    %v902 = vpack.c.b16 %v731, %v728
    %v903 = vpack.c.b16 %v732, %v729
    %v904 = vpack.c.b16 %v733, %v730
    %v905 = vpack.c.b16 %v737, %v734
    %v906 = vpack.c.b16 %v738, %v735
    %v907 = vpack.c.b16 %v739, %v736
    %v908 = vpack.c.b16 %v743, %v740
    %v909 = vpack.c.b16 %v744, %v741
    %v910 = vpack.c.b16 %v745, %v742
    %v911 = vpack.c.b16 %v749, %v746
    %v912 = vpack.c.b16 %v750, %v747
    %v913 = vpack.c.b16 %v751, %v748
    %v914 = vpack.c.b16 %v755, %v752
    %v915 = vpack.c.b16 %v756, %v753
    %v916 = vpack.c.b16 %v757, %v754
    %v917 = vpack.c.b16 %v761, %v758
    %v918 = vpack.c.b16 %v762, %v759
    %v919 = vpack.c.b16 %v763, %v760
    %v920 = vpack.c.b16 %v767, %v764
    %v921 = vpack.c.b16 %v768, %v765
    %v922 = vpack.c.b16 %v769, %v766
    %v923 = vpack.c.b16 %v773, %v770
    %v924 = vpack.c.b16 %v774, %v771
    %v925 = vpack.c.b16 %v775, %v772
    %v926 = vpack.c.b16 %v779, %v776
    %v927 = vpack.c.b16 %v780, %v777
    %v928 = vpack.c.b16 %v781, %v778
    %vm1076 = vcmask 130048
    %v1078 = vsel %vm1076, %v87, 0
    %1080 = vmatpush.bf16.msra.mxu0 %v803
    %1081 = vmatpush.bf16.msra.mxu0 %v800
    %1082 = vmatpush.bf16.msra.mxu0 %v797
    %1083 = vmatpush.bf16.msra.mxu0 %v794
    %1084 = vmatpush.bf16.msra.mxu0 %v791
    %1085 = vmatpush.bf16.msra.mxu0 %v788
    %1086 = vmatpush.bf16.msra.mxu0 %v785
    %1087 = vmatpush.bf16.msra.mxu0 %v782
    %1088 = vmatmul.bf16.gmra.mxu0 %v81
    %v1089 = vpop.f32.mrf.mxu0
    %v1090 = vadd.f32 %v286, %v1089
    %v1091 = vpop.f32.mrf.mxu0
    %1092 = vdwg.mxu0
    %1093 = vmatpush.bf16.msra.mxu0 %v827
    %1094 = vmatpush.bf16.msra.mxu0 %v824
    %1095 = vmatpush.bf16.msra.mxu0 %v821
    %1096 = vmatpush.bf16.msra.mxu0 %v818
    %1097 = vmatpush.bf16.msra.mxu0 %v815
    %1098 = vmatpush.bf16.msra.mxu0 %v812
    %1099 = vmatpush.bf16.msra.mxu0 %v809
    %1100 = vmatpush.bf16.msra.mxu0 %v806
    %1101 = vmatmul.bf16.gmra.mxu0 %v82
    %v1102 = vpop.f32.mrf.mxu0
    %v1103 = vadd.f32 %v1090, %v1102
    %v1104 = vpop.f32.mrf.mxu0
    %1105 = vdwg.mxu0
    %1106 = vmatpush.bf16.msra.mxu0 %v851
    %1107 = vmatpush.bf16.msra.mxu0 %v848
    %1108 = vmatpush.bf16.msra.mxu0 %v845
    %1109 = vmatpush.bf16.msra.mxu0 %v842
    %1110 = vmatpush.bf16.msra.mxu0 %v839
    %1111 = vmatpush.bf16.msra.mxu0 %v836
    %1112 = vmatpush.bf16.msra.mxu0 %v833
    %1113 = vmatpush.bf16.msra.mxu0 %v830
    %1114 = vmatmul.bf16.gmra.mxu0 %v83
    %v1115 = vpop.f32.mrf.mxu0
    %v1116 = vadd.f32 %v1103, %v1115
    %v1117 = vpop.f32.mrf.mxu0
    %1118 = vdwg.mxu0
    %1119 = vmatpush.bf16.msra.mxu0 %v875
    %1120 = vmatpush.bf16.msra.mxu0 %v872
    %1121 = vmatpush.bf16.msra.mxu0 %v869
    %1122 = vmatpush.bf16.msra.mxu0 %v866
    %1123 = vmatpush.bf16.msra.mxu0 %v863
    %1124 = vmatpush.bf16.msra.mxu0 %v860
    %1125 = vmatpush.bf16.msra.mxu0 %v857
    %1126 = vmatpush.bf16.msra.mxu0 %v854
    %1127 = vmatmul.bf16.gmra.mxu0 %v84
    %v1128 = vpop.f32.mrf.mxu0
    %v1129 = vadd.f32 %v1116, %v1128
    %v1130 = vpop.f32.mrf.mxu0
    %1131 = vdwg.mxu0
    %1132 = vmatpush.bf16.msra.mxu0 %v899
    %1133 = vmatpush.bf16.msra.mxu0 %v896
    %1134 = vmatpush.bf16.msra.mxu0 %v893
    %1135 = vmatpush.bf16.msra.mxu0 %v890
    %1136 = vmatpush.bf16.msra.mxu0 %v887
    %1137 = vmatpush.bf16.msra.mxu0 %v884
    %1138 = vmatpush.bf16.msra.mxu0 %v881
    %1139 = vmatpush.bf16.msra.mxu0 %v878
    %1140 = vmatmul.bf16.gmra.mxu0 %v85
    %v1141 = vpop.f32.mrf.mxu0
    %v1142 = vadd.f32 %v1129, %v1141
    %v1143 = vpop.f32.mrf.mxu0
    %1144 = vdwg.mxu0
    %1145 = vmatpush.bf16.msra.mxu0 %v923
    %1146 = vmatpush.bf16.msra.mxu0 %v920
    %1147 = vmatpush.bf16.msra.mxu0 %v917
    %1148 = vmatpush.bf16.msra.mxu0 %v914
    %1149 = vmatpush.bf16.msra.mxu0 %v911
    %1150 = vmatpush.bf16.msra.mxu0 %v908
    %1151 = vmatpush.bf16.msra.mxu0 %v905
    %1152 = vmatpush.bf16.msra.mxu0 %v902
    %1153 = vmatmul.bf16.gmra.mxu0 %v86
    %v1154 = vpop.f32.mrf.mxu0
    %v1155 = vadd.f32 %v1142, %v1154
    %v1156 = vpop.f32.mrf.mxu0
    %1157 = vdwg.mxu0
    %1158 = vmatpush.bf16.msra.mxu0 0
    %1159 = vmatpush.bf16.msra.mxu0 0
    %1160 = vmatpush.bf16.msra.mxu0 0
    %1161 = vmatpush.bf16.msra.mxu0 0
    %1162 = vmatpush.bf16.msra.mxu0 0
    %1163 = vmatpush.bf16.msra.mxu0 0
    %1164 = vmatpush.bf16.msra.mxu0 0
    %1165 = vmatpush.bf16.msra.mxu0 %v926
    %1166 = vmatmul.bf16.gmra.mxu0 %v1078
    %v1167 = vpop.f32.mrf.mxu0
    %v1168 = vadd.f32 %v1155, %v1167
    %v1169 = vpop.f32.mrf.mxu0
    %1170 = vdwg.mxu0
    %1171 = vmatpush.bf16.msra.mxu0 %v804
    %1172 = vmatpush.bf16.msra.mxu0 %v801
    %1173 = vmatpush.bf16.msra.mxu0 %v798
    %1174 = vmatpush.bf16.msra.mxu0 %v795
    %1175 = vmatpush.bf16.msra.mxu0 %v792
    %1176 = vmatpush.bf16.msra.mxu0 %v789
    %1177 = vmatpush.bf16.msra.mxu0 %v786
    %1178 = vmatpush.bf16.msra.mxu0 %v783
    %1179 = vmatmul.bf16.gmra.mxu0 %v81
    %v1180 = vpop.f32.mrf.mxu0
    %v1181 = vadd.f32 %v287, %v1180
    %v1182 = vpop.f32.mrf.mxu0
    %1183 = vdwg.mxu0
    %1184 = vmatpush.bf16.msra.mxu0 %v828
    %1185 = vmatpush.bf16.msra.mxu0 %v825
    %1186 = vmatpush.bf16.msra.mxu0 %v822
    %1187 = vmatpush.bf16.msra.mxu0 %v819
    %1188 = vmatpush.bf16.msra.mxu0 %v816
    %1189 = vmatpush.bf16.msra.mxu0 %v813
    %1190 = vmatpush.bf16.msra.mxu0 %v810
    %1191 = vmatpush.bf16.msra.mxu0 %v807
    %1192 = vmatmul.bf16.gmra.mxu0 %v82
    %v1193 = vpop.f32.mrf.mxu0
    %v1194 = vadd.f32 %v1181, %v1193
    %v1195 = vpop.f32.mrf.mxu0
    %1196 = vdwg.mxu0
    %1197 = vmatpush.bf16.msra.mxu0 %v852
    %1198 = vmatpush.bf16.msra.mxu0 %v849
    %1199 = vmatpush.bf16.msra.mxu0 %v846
    %1200 = vmatpush.bf16.msra.mxu0 %v843
    %1201 = vmatpush.bf16.msra.mxu0 %v840
    %1202 = vmatpush.bf16.msra.mxu0 %v837
    %1203 = vmatpush.bf16.msra.mxu0 %v834
    %1204 = vmatpush.bf16.msra.mxu0 %v831
    %1205 = vmatmul.bf16.gmra.mxu0 %v83
    %v1206 = vpop.f32.mrf.mxu0
    %v1207 = vadd.f32 %v1194, %v1206
    %v1208 = vpop.f32.mrf.mxu0
    %1209 = vdwg.mxu0
    %1210 = vmatpush.bf16.msra.mxu0 %v876
    %1211 = vmatpush.bf16.msra.mxu0 %v873
    %1212 = vmatpush.bf16.msra.mxu0 %v870
    %1213 = vmatpush.bf16.msra.mxu0 %v867
    %1214 = vmatpush.bf16.msra.mxu0 %v864
    %1215 = vmatpush.bf16.msra.mxu0 %v861
    %1216 = vmatpush.bf16.msra.mxu0 %v858
    %1217 = vmatpush.bf16.msra.mxu0 %v855
    %1218 = vmatmul.bf16.gmra.mxu0 %v84
    %v1219 = vpop.f32.mrf.mxu0
    %v1220 = vadd.f32 %v1207, %v1219
    %v1221 = vpop.f32.mrf.mxu0
    %1222 = vdwg.mxu0
    %1223 = vmatpush.bf16.msra.mxu0 %v900
    %1224 = vmatpush.bf16.msra.mxu0 %v897
    %1225 = vmatpush.bf16.msra.mxu0 %v894
    %1226 = vmatpush.bf16.msra.mxu0 %v891
    %1227 = vmatpush.bf16.msra.mxu0 %v888
    %1228 = vmatpush.bf16.msra.mxu0 %v885
    %1229 = vmatpush.bf16.msra.mxu0 %v882
    %1230 = vmatpush.bf16.msra.mxu0 %v879
    %1231 = vmatmul.bf16.gmra.mxu0 %v85
    %v1232 = vpop.f32.mrf.mxu0
    %v1233 = vadd.f32 %v1220, %v1232
    %v1234 = vpop.f32.mrf.mxu0
    %1235 = vdwg.mxu0
    %1236 = vmatpush.bf16.msra.mxu0 %v924
    %1237 = vmatpush.bf16.msra.mxu0 %v921
    %1238 = vmatpush.bf16.msra.mxu0 %v918
    %1239 = vmatpush.bf16.msra.mxu0 %v915
    %1240 = vmatpush.bf16.msra.mxu0 %v912
    %1241 = vmatpush.bf16.msra.mxu0 %v909
    %1242 = vmatpush.bf16.msra.mxu0 %v906
    %1243 = vmatpush.bf16.msra.mxu0 %v903
    %1244 = vmatmul.bf16.gmra.mxu0 %v86
    %v1245 = vpop.f32.mrf.mxu0
    %v1246 = vadd.f32 %v1233, %v1245
    %v1247 = vpop.f32.mrf.mxu0
    %1248 = vdwg.mxu0
    %1249 = vmatpush.bf16.msra.mxu0 0
    %1250 = vmatpush.bf16.msra.mxu0 0
    %1251 = vmatpush.bf16.msra.mxu0 0
    %1252 = vmatpush.bf16.msra.mxu0 0
    %1253 = vmatpush.bf16.msra.mxu0 0
    %1254 = vmatpush.bf16.msra.mxu0 0
    %1255 = vmatpush.bf16.msra.mxu0 0
    %1256 = vmatpush.bf16.msra.mxu0 %v927
    %1257 = vmatmul.bf16.gmra.mxu0 %v1078
    %v1258 = vpop.f32.mrf.mxu0
    %v1259 = vadd.f32 %v1246, %v1258
    %v1260 = vpop.f32.mrf.mxu0
    %1261 = vdwg.mxu0
    %1262 = vmatpush.bf16.msra.mxu0 %v805
    %1263 = vmatpush.bf16.msra.mxu0 %v802
    %1264 = vmatpush.bf16.msra.mxu0 %v799
    %1265 = vmatpush.bf16.msra.mxu0 %v796
    %1266 = vmatpush.bf16.msra.mxu0 %v793
    %1267 = vmatpush.bf16.msra.mxu0 %v790
    %1268 = vmatpush.bf16.msra.mxu0 %v787
    %1269 = vmatpush.bf16.msra.mxu0 %v784
    %1270 = vmatmul.bf16.gmra.mxu0 %v81
    %v1271 = vpop.f32.mrf.mxu0
    %v1272 = vadd.f32 %v288, %v1271
    %v1273 = vpop.f32.mrf.mxu0
    %1274 = vdwg.mxu0
    %1275 = vmatpush.bf16.msra.mxu0 %v829
    %1276 = vmatpush.bf16.msra.mxu0 %v826
    %1277 = vmatpush.bf16.msra.mxu0 %v823
    %1278 = vmatpush.bf16.msra.mxu0 %v820
    %1279 = vmatpush.bf16.msra.mxu0 %v817
    %1280 = vmatpush.bf16.msra.mxu0 %v814
    %1281 = vmatpush.bf16.msra.mxu0 %v811
    %1282 = vmatpush.bf16.msra.mxu0 %v808
    %1283 = vmatmul.bf16.gmra.mxu0 %v82
    %v1284 = vpop.f32.mrf.mxu0
    %v1285 = vadd.f32 %v1272, %v1284
    %v1286 = vpop.f32.mrf.mxu0
    %1287 = vdwg.mxu0
    %1288 = vmatpush.bf16.msra.mxu0 %v853
    %1289 = vmatpush.bf16.msra.mxu0 %v850
    %1290 = vmatpush.bf16.msra.mxu0 %v847
    %1291 = vmatpush.bf16.msra.mxu0 %v844
    %1292 = vmatpush.bf16.msra.mxu0 %v841
    %1293 = vmatpush.bf16.msra.mxu0 %v838
    %1294 = vmatpush.bf16.msra.mxu0 %v835
    %1295 = vmatpush.bf16.msra.mxu0 %v832
    %1296 = vmatmul.bf16.gmra.mxu0 %v83
    %v1297 = vpop.f32.mrf.mxu0
    %v1298 = vadd.f32 %v1285, %v1297
    %v1299 = vpop.f32.mrf.mxu0
    %1300 = vdwg.mxu0
    %1301 = vmatpush.bf16.msra.mxu0 %v877
    %1302 = vmatpush.bf16.msra.mxu0 %v874
    %1303 = vmatpush.bf16.msra.mxu0 %v871
    %1304 = vmatpush.bf16.msra.mxu0 %v868
    %1305 = vmatpush.bf16.msra.mxu0 %v865
    %1306 = vmatpush.bf16.msra.mxu0 %v862
    %1307 = vmatpush.bf16.msra.mxu0 %v859
    %1308 = vmatpush.bf16.msra.mxu0 %v856
    %1309 = vmatmul.bf16.gmra.mxu0 %v84
    %v1310 = vpop.f32.mrf.mxu0
    %v1311 = vadd.f32 %v1298, %v1310
    %v1312 = vpop.f32.mrf.mxu0
    %1313 = vdwg.mxu0
    %1314 = vmatpush.bf16.msra.mxu0 %v901
    %1315 = vmatpush.bf16.msra.mxu0 %v898
    %1316 = vmatpush.bf16.msra.mxu0 %v895
    %1317 = vmatpush.bf16.msra.mxu0 %v892
    %1318 = vmatpush.bf16.msra.mxu0 %v889
    %1319 = vmatpush.bf16.msra.mxu0 %v886
    %1320 = vmatpush.bf16.msra.mxu0 %v883
    %1321 = vmatpush.bf16.msra.mxu0 %v880
    %1322 = vmatmul.bf16.gmra.mxu0 %v85
    %v1323 = vpop.f32.mrf.mxu0
    %v1324 = vadd.f32 %v1311, %v1323
    %v1325 = vpop.f32.mrf.mxu0
    %1326 = vdwg.mxu0
    %1327 = vmatpush.bf16.msra.mxu0 %v925
    %1328 = vmatpush.bf16.msra.mxu0 %v922
    %1329 = vmatpush.bf16.msra.mxu0 %v919
    %1330 = vmatpush.bf16.msra.mxu0 %v916
    %1331 = vmatpush.bf16.msra.mxu0 %v913
    %1332 = vmatpush.bf16.msra.mxu0 %v910
    %1333 = vmatpush.bf16.msra.mxu0 %v907
    %1334 = vmatpush.bf16.msra.mxu0 %v904
    %1335 = vmatmul.bf16.gmra.mxu0 %v86
    %v1336 = vpop.f32.mrf.mxu0
    %v1337 = vadd.f32 %v1324, %v1336
    %v1338 = vpop.f32.mrf.mxu0
    %1339 = vdwg.mxu0
    %1340 = vmatpush.bf16.msra.mxu0 0
    %1341 = vmatpush.bf16.msra.mxu0 0
    %1342 = vmatpush.bf16.msra.mxu0 0
    %1343 = vmatpush.bf16.msra.mxu0 0
    %1344 = vmatpush.bf16.msra.mxu0 0
    %1345 = vmatpush.bf16.msra.mxu0 0
    %1346 = vmatpush.bf16.msra.mxu0 0
    %1347 = vmatpush.bf16.msra.mxu0 %v928
    %1348 = vmatmul.bf16.gmra.mxu0 %v1078
    %v1349 = vpop.f32.mrf.mxu0
    %v1350 = vadd.f32 %v1337, %v1349
    %v1351 = vpop.f32.mrf.mxu0
    %1352 = vdwg.mxu0
    %v1353 = vmax.f32 %v1168, 0.0
    %v1354 = vmax.f32 %v1259, 0.0
    %v1355 = vmax.f32 %v1350, 0.0
    %v1356 = vpack.c.bf16 %v1353, %v1353
    %v1357 = vpack.c.bf16 %v1354, %v1354
    %v1358 = vpack.c.bf16 %v1355, %v1355
    %v1359 = vld [vmem:[%s3] sm:$0xf]
    %v1360 = vld [vmem:[%s3 + $0x4] sm:$0xf]
    %v1361 = vld [vmem:[%s3 + $0x8] sm:$0xf]
    %v1362 = vld [vmem:[%s3 + $0xc] sm:$0xf]
    %v1363 = vld [vmem:[%s3 + $0x10] sm:$0xf]
    %v1364 = vld [vmem:[%s3 + $0x14] sm:$0xf]
    %v1365 = vld [vmem:[%s3 + $0x18] sm:$0xf]
    %v1366 = vld [vmem:[%s3 + $0x1c] sm:$0xf]
    %v1367 = vld [vmem:[%s3 + $0x20] sm:$0xf]
    %v1368 = vld [vmem:[%s3 + $0x24] sm:$0xf]
    %v1369 = vld [vmem:[%s3 + $0x28] sm:$0xf]
    %v1370 = vld [vmem:[%s3 + $0x2c] sm:$0xf]
    %v1371 = vld [vmem:[%s3 + $0x30] sm:$0xf]
    %v1372 = vld [vmem:[%s3 + $0x34] sm:$0xf]
    %v1373 = vld [vmem:[%s3 + $0x38] sm:$0xf]
    %v1374 = vld [vmem:[%s3 + $0x3c] sm:$0xf]
    %v1375 = vld [vmem:[%s3 + $0x40] sm:$0xf]
    %v1376 = vld [vmem:[%s3 + $0x44] sm:$0xf]
    %v1377 = vld [vmem:[%s3 + $0x48] sm:$0xf]
    %v1378 = vld [vmem:[%s3 + $0x4c] sm:$0xf]
    %v1379 = vld [vmem:[%s3 + $0x50] sm:$0xf]
    %v1380 = vld [vmem:[%s3 + $0x54] sm:$0xf]
    %v1381 = vld [vmem:[%s3 + $0x58] sm:$0xf]
    %v1382 = vld [vmem:[%s3 + $0x5c] sm:$0xf]
    %v1383 = vld [vmem:[%s3 + $0x60] sm:$0xf]
    %v1384 = vld [vmem:[%s3 + $0x64] sm:$0xf]
    %v1385 = vld [vmem:[%s3 + $0x68] sm:$0xf]
    %v1386 = vld [vmem:[%s3 + $0x6c] sm:$0xf]
    %v1387 = vld [vmem:[%s3 + $0x70] sm:$0xf]
    %v1388 = vld [vmem:[%s3 + $0x74] sm:$0xf]
    %v1389 = vld [vmem:[%s3 + $0x78] sm:$0xf]
    %v1390 = vld [vmem:[%s3 + $0x7c] sm:$0xf]
    %v1391 = vld [vmem:[%s3 + $0x80] sm:$0xf]
    %v1392 = vld [vmem:[%s3 + $0x84] sm:$0xf]
    %v1393 = vld [vmem:[%s3 + $0x88] sm:$0xf]
    %v1394 = vld [vmem:[%s3 + $0x8c] sm:$0xf]
    %v1395 = vld [vmem:[%s3 + $0x90] sm:$0xf]
    %v1396 = vld [vmem:[%s3 + $0x94] sm:$0xf]
    %v1397 = vld [vmem:[%s3 + $0x98] sm:$0xf]
    %v1398 = vld [vmem:[%s3 + $0x9c] sm:$0xf]
    %v1399 = vld [vmem:[%s3 + $0xa0] sm:$0xf]
    %v1400 = vld [vmem:[%s3 + $0xa4] sm:$0xf]
    %v1401 = vld [vmem:[%s3 + $0xa8] sm:$0xf]
    %v1402 = vld [vmem:[%s3 + $0xac] sm:$0xf]
    %v1403 = vld [vmem:[%s3 + $0xb0] sm:$0xf]
    %v1404 = vld [vmem:[%s3 + $0xb4] sm:$0xf]
    %v1405 = vld [vmem:[%s3 + $0xb8] sm:$0xf]
    %v1406 = vld [vmem:[%s3 + $0xbc] sm:$0xf]
    %v1407 = vld [vmem:[%s4] sm:$0x1]
    %v1409 = vperm.slane %v1407, 0
    %v1459 = vunpack.c.l.b16 %v1359
    %v1460 = vunpack.c.l.b16 %v1360
    %v1461 = vunpack.c.l.b16 %v1361
    %v1462 = vunpack.c.l.b16 %v1362
    %v1463 = vunpack.c.l.b16 %v1363
    %v1464 = vunpack.c.l.b16 %v1364
    %v1465 = vunpack.c.l.b16 %v1365
    %v1466 = vunpack.c.l.b16 %v1366
    %v1467 = vunpack.c.l.b16 %v1367
    %v1468 = vunpack.c.l.b16 %v1368
    %v1469 = vunpack.c.l.b16 %v1369
    %v1470 = vunpack.c.l.b16 %v1370
    %v1471 = vunpack.c.l.b16 %v1371
    %v1472 = vunpack.c.l.b16 %v1372
    %v1473 = vunpack.c.l.b16 %v1373
    %v1474 = vunpack.c.l.b16 %v1374
    %v1475 = vunpack.c.l.b16 %v1375
    %v1476 = vunpack.c.l.b16 %v1376
    %v1477 = vunpack.c.l.b16 %v1377
    %v1478 = vunpack.c.l.b16 %v1378
    %v1479 = vunpack.c.l.b16 %v1379
    %v1480 = vunpack.c.l.b16 %v1380
    %v1481 = vunpack.c.l.b16 %v1381
    %v1482 = vunpack.c.l.b16 %v1382
    %v1483 = vunpack.c.l.b16 %v1383
    %v1484 = vunpack.c.l.b16 %v1384
    %v1485 = vunpack.c.l.b16 %v1385
    %v1486 = vunpack.c.l.b16 %v1386
    %v1487 = vunpack.c.l.b16 %v1387
    %v1488 = vunpack.c.l.b16 %v1388
    %v1489 = vunpack.c.l.b16 %v1389
    %v1490 = vunpack.c.l.b16 %v1390
    %v1491 = vunpack.c.l.b16 %v1391
    %v1492 = vunpack.c.l.b16 %v1392
    %v1493 = vunpack.c.l.b16 %v1393
    %v1494 = vunpack.c.l.b16 %v1394
    %v1495 = vunpack.c.l.b16 %v1395
    %v1496 = vunpack.c.l.b16 %v1396
    %v1497 = vunpack.c.l.b16 %v1397
    %v1498 = vunpack.c.l.b16 %v1398
    %v1499 = vunpack.c.l.b16 %v1399
    %v1500 = vunpack.c.l.b16 %v1400
    %v1501 = vunpack.c.l.b16 %v1401
    %v1502 = vunpack.c.l.b16 %v1402
    %v1503 = vunpack.c.l.b16 %v1403
    %v1504 = vunpack.c.l.b16 %v1404
    %v1505 = vunpack.c.l.b16 %v1405
    %v1506 = vunpack.c.l.b16 %v1406
    %v1507 = vpack.c.b16 %v1460, %v1459
    %v1508 = vpack.c.b16 %v1462, %v1461
    %v1509 = vpack.c.b16 %v1464, %v1463
    %v1510 = vpack.c.b16 %v1466, %v1465
    %v1511 = vpack.c.b16 %v1468, %v1467
    %v1512 = vpack.c.b16 %v1470, %v1469
    %v1513 = vpack.c.b16 %v1472, %v1471
    %v1514 = vpack.c.b16 %v1474, %v1473
    %v1515 = vpack.c.b16 %v1476, %v1475
    %v1516 = vpack.c.b16 %v1478, %v1477
    %v1517 = vpack.c.b16 %v1480, %v1479
    %v1518 = vpack.c.b16 %v1482, %v1481
    %v1519 = vpack.c.b16 %v1484, %v1483
    %v1520 = vpack.c.b16 %v1486, %v1485
    %v1521 = vpack.c.b16 %v1488, %v1487
    %v1522 = vpack.c.b16 %v1490, %v1489
    %v1523 = vpack.c.b16 %v1492, %v1491
    %v1524 = vpack.c.b16 %v1494, %v1493
    %v1525 = vpack.c.b16 %v1496, %v1495
    %v1526 = vpack.c.b16 %v1498, %v1497
    %v1527 = vpack.c.b16 %v1500, %v1499
    %v1528 = vpack.c.b16 %v1502, %v1501
    %v1529 = vpack.c.b16 %v1504, %v1503
    %v1530 = vpack.c.b16 %v1506, %v1505
    %1555 = vmatpush.bf16.msra.mxu0 %v1514
    %1556 = vmatpush.bf16.msra.mxu0 %v1513
    %1557 = vmatpush.bf16.msra.mxu0 %v1512
    %1558 = vmatpush.bf16.msra.mxu0 %v1511
    %1559 = vmatpush.bf16.msra.mxu0 %v1510
    %1560 = vmatpush.bf16.msra.mxu0 %v1509
    %1561 = vmatpush.bf16.msra.mxu0 %v1508
    %1562 = vmatpush.bf16.msra.mxu0 %v1507
    %1563 = vmatmul.bf16.gmra.mxu0 %v1356
    %v1564 = vpop.f32.mrf.mxu0
    %v1565 = vadd.f32 %v1409, %v1564
    %v1566 = vpop.f32.mrf.mxu0
    %1567 = vdwg.mxu0
    %1568 = vmatpush.bf16.msra.mxu0 %v1522
    %1569 = vmatpush.bf16.msra.mxu0 %v1521
    %1570 = vmatpush.bf16.msra.mxu0 %v1520
    %1571 = vmatpush.bf16.msra.mxu0 %v1519
    %1572 = vmatpush.bf16.msra.mxu0 %v1518
    %1573 = vmatpush.bf16.msra.mxu0 %v1517
    %1574 = vmatpush.bf16.msra.mxu0 %v1516
    %1575 = vmatpush.bf16.msra.mxu0 %v1515
    %1576 = vmatmul.bf16.gmra.mxu0 %v1357
    %v1577 = vpop.f32.mrf.mxu0
    %v1578 = vadd.f32 %v1565, %v1577
    %v1579 = vpop.f32.mrf.mxu0
    %1580 = vdwg.mxu0
    %1581 = vmatpush.bf16.msra.mxu0 %v1530
    %1582 = vmatpush.bf16.msra.mxu0 %v1529
    %1583 = vmatpush.bf16.msra.mxu0 %v1528
    %1584 = vmatpush.bf16.msra.mxu0 %v1527
    %1585 = vmatpush.bf16.msra.mxu0 %v1526
    %1586 = vmatpush.bf16.msra.mxu0 %v1525
    %1587 = vmatpush.bf16.msra.mxu0 %v1524
    %1588 = vmatpush.bf16.msra.mxu0 %v1523
    %1589 = vmatmul.bf16.gmra.mxu0 %v1358
    %v1590 = vpop.f32.mrf.mxu0
    %v1591 = vadd.f32 %v1578, %v1590
    %v1592 = vpop.f32.mrf.mxu0
    %1593 = vdwg.mxu0
    %v1594 = vmax.f32 %v1591, 0.0
    %v1595 = vpack.c.bf16 %v1594, %v1594
    %v1596 = vld [vmem:[#allocation5] sm:$0xf]
    %v1597 = vld [vmem:[#allocation5 + $0x4] sm:$0xf]
    %v1598 = vld [vmem:[#allocation5 + $0x8] sm:$0xf]
    %v1599 = vld [vmem:[#allocation5 + $0xc] sm:$0xf]
    %v1600 = vld [vmem:[#allocation5 + $0x10] sm:$0xf]
    %v1601 = vld [vmem:[#allocation5 + $0x14] sm:$0xf]
    %v1602 = vld [vmem:[#allocation5 + $0x18] sm:$0xf]
    %v1603 = vld [vmem:[#allocation5 + $0x1c] sm:$0xf]
    %v1604 = vld [vmem:[#allocation5 + $0x20] sm:$0xf]
    %v1605 = vld [vmem:[#allocation5 + $0x24] sm:$0xf]
    %v1606 = vld [vmem:[#allocation5 + $0x28] sm:$0xf]
    %v1607 = vld [vmem:[#allocation5 + $0x2c] sm:$0xf]
    %v1608 = vld [vmem:[#allocation5 + $0x30] sm:$0xf]
    %v1609 = vld [vmem:[#allocation5 + $0x34] sm:$0xf]
    %v1610 = vld [vmem:[#allocation5 + $0x38] sm:$0xf]
    %v1611 = vld [vmem:[#allocation5 + $0x3c] sm:$0xf]
    %v1612 = vld [vmem:[%s6] sm:$0x1]
    %v1614 = vperm.slane %v1612, 0
    %v1632 = vunpack.c.l.b16 %v1596
    %v1633 = vunpack.c.l.b16 %v1597
    %v1634 = vunpack.c.l.b16 %v1598
    %v1635 = vunpack.c.l.b16 %v1599
    %v1636 = vunpack.c.l.b16 %v1600
    %v1637 = vunpack.c.l.b16 %v1601
    %v1638 = vunpack.c.l.b16 %v1602
    %v1639 = vunpack.c.l.b16 %v1603
    %v1640 = vunpack.c.l.b16 %v1604
    %v1641 = vunpack.c.l.b16 %v1605
    %v1642 = vunpack.c.l.b16 %v1606
    %v1643 = vunpack.c.l.b16 %v1607
    %v1644 = vunpack.c.l.b16 %v1608
    %v1645 = vunpack.c.l.b16 %v1609
    %v1646 = vunpack.c.l.b16 %v1610
    %v1647 = vunpack.c.l.b16 %v1611
    %v1648 = vpack.c.b16 %v1633, %v1632
    %v1649 = vpack.c.b16 %v1635, %v1634
    %v1650 = vpack.c.b16 %v1637, %v1636
    %v1651 = vpack.c.b16 %v1639, %v1638
    %v1652 = vpack.c.b16 %v1641, %v1640
    %v1653 = vpack.c.b16 %v1643, %v1642
    %v1654 = vpack.c.b16 %v1645, %v1644
    %v1655 = vpack.c.b16 %v1647, %v1646
    %1664 = vmatpush.bf16.msra.mxu0 %v1655
    %1665 = vmatpush.bf16.msra.mxu0 %v1654
    %1666 = vmatpush.bf16.msra.mxu0 %v1653
    %1667 = vmatpush.bf16.msra.mxu0 %v1652
    %1668 = vmatpush.bf16.msra.mxu0 %v1651
    %1669 = vmatpush.bf16.msra.mxu0 %v1650
    %1670 = vmatpush.bf16.msra.mxu0 %v1649
    %1671 = vmatpush.bf16.msra.mxu0 %v1648
    %1672 = vmatmul.bf16.gmra.mxu0 %v1595
    %v1673 = vpop.f32.mrf.mxu0
    %v1674 = vadd.f32 %v1614, %v1673
    %v1675 = vpop.f32.mrf.mxu0
    %1676 = vdwg.mxu0
    %1677 = vst [vmem:[#allocation7] sm:$0x3] %v1674
    // Predicated region
    $region38: #{lenet300_forward.1} parent=1 // pred_check
      _
    $region39: #{lenet300_forward.1} parent=1 // pred_check_branch
      %1679 = sbr.rel (0) target = $region41
    $region40: #{lenet300_forward.1} parent=1 // pred_region
      %1681 = vsyncadd [#allocation4], 0
      %s1683 = sshll.u32 [#allocation7], 4
      %s1684 = int_to_ptr.vmem [resolvable:$true] %s1683
      %s1685 = sshll.u32 %s7, 4
      %s1686 = int_to_ptr.hbm [resolvable:$true] %s1685
      %1688 = dma.vmem_to_hbm [thread:$0]  %s1684, 32, %s1686, [#allocation4]
    $region41: #{lenet300_forward.1} parent=1 // pred_fallthru
      _
    // Predicated region
    $region42: #{lenet300_forward.1} parent=1 // pred_check
      _
    $region43: #{lenet300_forward.1} parent=1 // pred_check_branch
      %1690 = sbr.rel (0) target = $region45
    $region44: #{lenet300_forward.1} parent=1 // pred_region
      %1692 = dma.done [#allocation4], 32
    $region45: #{lenet300_forward.1} parent=1 // pred_fallthru
      _
    %1693 = vsyncpa [#allocation3], 1
    %1694 = vsyncpa [#allocation6], 1
    %1695 = vsyncpa [#allocation4], 1

</llo_original>
